<compile_context>
chip_gen: v6e
topology: v6e:2x2x1
jax: 0.10.0
libtpu: 0.0.40
codegen_flags: <defaults>
</compile_context>

<pallas_src>
import functools
import math

import jax
import jax.numpy as jnp
from jax import lax
from jax.experimental import pallas as pl
from jax.experimental.pallas import tpu as pltpu


def make_pe(d_model: int, max_len: int = 5000) -> jnp.ndarray:
    """Builds the sinusoidal `pe` buffer exactly as the PyTorch __init__ does."""
    position = jnp.arange(max_len, dtype=jnp.float32)[:, None]
    div_term = jnp.exp(
        jnp.arange(0, d_model, 2, dtype=jnp.float32) * (-math.log(10000.0) / d_model)
    )
    pe = jnp.zeros((max_len, 1, d_model), dtype=jnp.float32)
    pe = pe.at[:, 0, 0::2].set(jnp.sin(position * div_term))
    pe = pe.at[:, 0, 1::2].set(jnp.cos(position * div_term))
    return pe


def _tile_pe(pe_block, reps):
    # (tile_s, D) -> (tile_s, reps*D); matches the b*D + d flattening of x.
    if reps == 1:
        return pe_block
    return jnp.tile(pe_block, (1, reps))


def _pe_add_kernel(x_ref, pe_ref, o_ref, *, reps):
    # Eval / p=0 path: y = x + pe on a lane-dense (tile_s, B*D) slab.
    o_ref[...] = (x_ref[...] + _tile_pe(pe_ref[...], reps)).astype(o_ref.dtype)


def _pe_add_dropout_kernel(seed_ref, x_ref, pe_ref, o_ref, *,
                           reps, k_row, k_col, base_mult, thresh, scale):
    """Training path: y = inverted_dropout(x + pe, p), counter-hash mask."""
    y = x_ref[...] + _tile_pe(pe_ref[...], reps)
    ts, bd = y.shape

    # Scalar base (scalar unit): seq-tile offset and seed mix folded into 1 word.
    base = (pl.program_id(0).astype(jnp.uint32) * jnp.uint32(base_mult)
            + seed_ref[0].astype(jnp.uint32) * jnp.uint32(0x85EBCA77))

    # Per-element linear (Weyl-style) mix of the global flat index, then a
    # short lowbias32-style finalizer.  uint32 wrap; tensors with > 2^32
    # elements would alias masks (not reachable for this module).
    row = lax.broadcasted_iota(jnp.uint32, (ts, bd), 0)
    col = lax.broadcasted_iota(jnp.uint32, (ts, bd), 1)
    h = row * jnp.uint32(k_row) + col * jnp.uint32(k_col) + base
    h = h ^ (h >> 16)
    h = h * jnp.uint32(0x7FEB352D)
    h = h ^ (h >> 15)
    h = h * jnp.uint32(0x846CA68B)

    keep = h >= jnp.uint32(thresh)            # P(keep) = 1 - p
    y32 = y.astype(jnp.float32)               # scale in f32, cast at the store
    o_ref[...] = jnp.where(keep, y32 * jnp.float32(scale), 0.0).astype(o_ref.dtype)


def _choose_tile_s(seq_len: int, row_bytes: int, itemsize: int) -> int:
    """Pick the seq-tile size for (tile_s, B*D) blocks."""
    sublane = 8 * max(1, 4 // max(1, itemsize))   # 8 f32 / 16 bf16 / 32 int8
    target_bytes = 2 * 1024 * 1024                # ~2 MiB block: near roofline,
    ts = max(1, target_bytes // max(1, row_bytes))  # fits every VMEM budget x6 bufs
    # Keep >= ~4 seq tiles when the sequence allows (v7x has 2 TensorCores).
    ts = min(ts, max(sublane, -(-seq_len // 4)))
    if ts >= seq_len:
        return int(seq_len)                       # full-dim block is always legal
    ts = max(8, (ts // sublane) * sublane)        # dtype-packed sublane multiple
    return int(min(ts, seq_len))


def positional_encoding(
    x: jnp.ndarray,
    pe: jnp.ndarray,
    *,
    dropout_p: float = 0.1,
    seed: int = 0,
    account_for_lang_token: bool = False,
    training: bool = True,
) -> jnp.ndarray:
    """Forward pass of PositionalEncoding as a single fused Pallas kernel."""
    S, B, D = x.shape
    start = 1 if account_for_lang_token else 0
    pe_2d = pe[start:start + S, 0, :]             # static slice of the rows we need
    if pe_2d.dtype != x.dtype:
        pe_2d = pe_2d.astype(x.dtype)

    p = float(dropout_p) if training else 0.0
    if p >= 1.0:
        return jnp.zeros_like(x)                  # degenerate: everything dropped

    BD = B * D
    x2 = x.reshape(S, BD)                         # contiguous -> metadata-only
    tile_s = _choose_tile_s(S, BD * x.dtype.itemsize, x.dtype.itemsize)
    grid = (pl.cdiv(S, tile_s),)

    x_spec = pl.BlockSpec((tile_s, BD), lambda s, *_: (s, 0))
    pe_spec = pl.BlockSpec((tile_s, D), lambda s, *_: (s, 0))
    out_spec = pl.BlockSpec((tile_s, BD), lambda s, *_: (s, 0))
    out_shape = jax.ShapeDtypeStruct((S, BD), x.dtype)
    compiler_params = pltpu.CompilerParams(dimension_semantics=("parallel",))

    if p == 0.0:
        y2 = pl.pallas_call(
            functools.partial(_pe_add_kernel, reps=B),
            out_shape=out_shape,
            grid_spec=pltpu.PrefetchScalarGridSpec(
                num_scalar_prefetch=0, grid=grid,
                in_specs=[x_spec, pe_spec], out_specs=out_spec),
            compiler_params=compiler_params,
        )(x2, pe_2d)
        return y2.reshape(S, B, D)

    C1 = 0x9E3779B1
    kernel = functools.partial(
        _pe_add_dropout_kernel,
        reps=B,
        k_row=(BD * C1) & 0xFFFFFFFF,             # row stride folded into multiplier
        k_col=C1,
        base_mult=(tile_s * BD * C1) & 0xFFFFFFFF,
        thresh=min(int(round(p * 2.0 ** 32)), 2 ** 32 - 1),
        scale=1.0 / (1.0 - p),
    )
    seed_arr = jnp.asarray([seed], dtype=jnp.int32)
    y2 = pl.pallas_call(
        kernel,
        out_shape=out_shape,
        grid_spec=pltpu.PrefetchScalarGridSpec(
            num_scalar_prefetch=1,                # seed lands in SMEM
            grid=grid,
            in_specs=[x_spec, pe_spec], out_specs=out_spec),
        compiler_params=compiler_params,
    )(seed_arr, x2, pe_2d)
    return y2.reshape(S, B, D)


if __name__ == "__main__":
    d_model = 32
    max_len = 64
    seq_len = 8
    batch = 2

    key = jax.random.PRNGKey(0)
    x = jax.random.normal(key, (seq_len, batch, d_model), dtype=jnp.float32)
    pe = make_pe(d_model, max_len)
    ref = x + pe[:seq_len]

    # Eval mode: dropout is the identity, output must match x + pe.
    y_eval = positional_encoding(
        x, pe, dropout_p=0.1, training=False, account_for_lang_token=False
    )
    y_eval = jax.block_until_ready(y_eval)
    assert y_eval.shape == x.shape and y_eval.dtype == x.dtype
    assert jnp.allclose(y_eval, ref, atol=1e-6, rtol=1e-6)

    # Eval mode with account_for_lang_token=True (pe rows shifted by one).
    y_tok = positional_encoding(
        x, pe, dropout_p=0.1, training=False, account_for_lang_token=True
    )
    y_tok = jax.block_until_ready(y_tok)
    assert jnp.allclose(y_tok, x + pe[1:seq_len + 1], atol=1e-6, rtol=1e-6)

    # Training mode: inverted dropout with p=0.1.
    p = 0.1
    y_train = positional_encoding(
        x, pe, dropout_p=p, seed=123, training=True, account_for_lang_token=False
    )
    y_train = jax.block_until_ready(y_train)
    assert y_train.shape == x.shape and y_train.dtype == x.dtype
    kept = y_train != 0.0
    # Kept elements are (x + pe) / (1-p); dropped elements are exactly 0.
    assert jnp.allclose(
        jnp.where(kept, y_train, 0.0),
        jnp.where(kept, ref * (1.0 / (1.0 - p)), 0.0),
        atol=1e-5, rtol=1e-5,
    )
    drop_frac = 1.0 - jnp.mean(kept.astype(jnp.float32))
    assert 0.0 < float(drop_frac) < 0.5, drop_frac

    print("KERNEL_OK")
</pallas_src>

<mosaic_0001>
module attributes {stable_mosaic.version = 11 : i64} {
  func.func @_pe_add_kernel(%arg0: i32, %arg1: memref<8x64xf32, #tpu.memory_space<vmem>>, %arg2: memref<8x32xf32, #tpu.memory_space<vmem>>, %arg3: memref<8x64xf32, #tpu.memory_space<vmem>>) attributes {dimension_semantics = [#tpu.dimension_semantics<parallel>], iteration_bounds = array<i64: 1>, scalar_prefetch = 0 : i64, scratch_operands = 0 : i64, tpu.core_type = #tpu.core_type<tc>, window_params = [{transform_indices = @transform_0, window_bounds = array<i64: 8, 64>}, {transform_indices = @transform_1, window_bounds = array<i64: 8, 32>}, {transform_indices = @transform_2, window_bounds = array<i64: 8, 64>}]} {
    %c0 = arith.constant 0 : index
    %c0_0 = arith.constant 0 : index
    %0 = vector.load %arg1[%c0, %c0_0] : memref<8x64xf32, #tpu.memory_space<vmem>>, vector<8x64xf32>
    %c0_1 = arith.constant 0 : index
    %c0_2 = arith.constant 0 : index
    %1 = vector.load %arg2[%c0_1, %c0_2] : memref<8x32xf32, #tpu.memory_space<vmem>>, vector<8x32xf32>
    %2 = tpu.concatenate %1, %1 in 1 : vector<8x32xf32>, vector<8x32xf32> -> vector<8x64xf32>
    %3 = arith.addf %0, %2 : vector<8x64xf32>
    %c0_3 = arith.constant 0 : index
    %c0_4 = arith.constant 0 : index
    %4 = vector.load %arg3[%c0_3, %c0_4] : memref<8x64xf32, #tpu.memory_space<vmem>>, vector<8x64xf32>
    tpu.vector_store %arg3[%c0_3, %c0_4], %3 {strides = array<i32>} : memref<8x64xf32, #tpu.memory_space<vmem>>, vector<8x64xf32>,
    return
  }
  func.func @transform_0(%arg0: i32) -> (i32, i32) {
    %c0_i32 = arith.constant 0 : i32
    %c0_i32_0 = arith.constant 0 : i32
    return %arg0, %c0_i32 : i32, i32
  }
  func.func @transform_1(%arg0: i32) -> (i32, i32) {
    %c0_i32 = arith.constant 0 : i32
    %c0_i32_0 = arith.constant 0 : i32
    return %arg0, %c0_i32 : i32, i32
  }
  func.func @transform_2(%arg0: i32) -> (i32, i32) {
    %c0_i32 = arith.constant 0 : i32
    %c0_i32_0 = arith.constant 0 : i32
    return %arg0, %c0_i32 : i32, i32
  }
}

</mosaic_0001>

<llo_original>
// kernel: tpu_custom_call.1
$region0: #{tpu_custom_call.1}
  #allocation0 [shape = 'u32[]', space=smem, size = 0x4, offset = 0x4, fixed_abs, tag = 'smem constant byte address 0x4 - core index']
  #allocation1 [shape = 'u32[144,128]{1,0:T(1,128)}', space=vmem, size = 0x12000, scoped, tag = 'internal scratch']
  %s0 = inlined_call_operand.hbm [shape: f32[8,64], index: 0, kind: input, shape index: {}]
  %s1 = inlined_call_operand.hbm [shape: f32[8,32], index: 1, kind: input, shape index: {}]
  %s2 = inlined_call_operand.hbm [shape: f32[8,64], index: 2, kind: output, shape index: {}]
  %s3 = sld [smem:[#allocation0]]
  $region26: #{tpu_custom_call.1} parent=0
    _
  %s5 = ssub.s32 1, %s3
  %s6 = scalar_select 0, %s5, %s3
  $region1: #{tpu_custom_call.1} parent=0
    #allocation2 [shape = 'u8[4096]{0}', space=vmem, size = 0x1000, scoped, tag = 'input window, operand 0, single buffered']
    #allocation3 [shape = 's32[1]{0}', space=sflag, size = 0x4, scoped, tag = 'scoped memory for tpu_custom_call.1']
    #allocation4 [shape = 's32[1]{0}', space=sflag, size = 0x4, scoped, tag = 'scoped memory for tpu_custom_call.1']
    #allocation5 [shape = 'u8[4096]{0}', space=vmem, size = 0x1000, scoped, tag = 'input window, operand 1, single buffered']
    #allocation6 [shape = 's32[1]{0}', space=sflag, size = 0x4, scoped, tag = 'scoped memory for tpu_custom_call.1']
    #allocation7 [shape = 'u8[4096]{0}', space=vmem, size = 0x1000, scoped, tag = 'output window, operand 0, single buffered']
    %7 = vsyncpa [#allocation3], 0
    %8 = vsyncpa [#allocation6], 0
    %9 = vsyncpa [#allocation4], 0
    // Predicated region
    $region2: #{tpu_custom_call.1} parent=1 // pred_check
      _
    $region3: #{tpu_custom_call.1} parent=1 // pred_check_branch
      %11 = sbr.rel (0) target = $region5
    $region4: #{tpu_custom_call.1} parent=1 // pred_region
      %s13 = ssub.s32 128, 128
      %14 = vsyncadd [#allocation3], %s13
      %s16 = sshll.u32 [#allocation2], 4
      %s17 = int_to_ptr.vmem [resolvable:$true] %s16
      %19 = dma.hbm_to_vmem [thread:$0]  %s0, 128, %s17, [#allocation3]
    $region5: #{tpu_custom_call.1} parent=1 // pred_fallthru
      _
    // Predicated region
    $region6: #{tpu_custom_call.1} parent=1 // pred_check
      _
    $region7: #{tpu_custom_call.1} parent=1 // pred_check_branch
      %21 = sbr.rel (0) target = $region9
    $region8: #{tpu_custom_call.1} parent=1 // pred_region
      %s23 = ssub.s32 128, 128
      %24 = vsyncadd [#allocation6], %s23
      %s26 = sshll.u32 [#allocation5], 4
      %s27 = int_to_ptr.vmem [resolvable:$true] %s26
      %29 = dma.hbm_to_vmem [thread:$0]  %s1, 128, %s27, [#allocation6]
    $region9: #{tpu_custom_call.1} parent=1 // pred_fallthru
      _
    // Predicated region
    $region10: #{tpu_custom_call.1} parent=1 // pred_check
      _
    $region11: #{tpu_custom_call.1} parent=1 // pred_check_branch
      %31 = sbr.rel (0) target = $region13
    $region12: #{tpu_custom_call.1} parent=1 // pred_region
      %32 = dma.done [#allocation3], 128
    $region13: #{tpu_custom_call.1} parent=1 // pred_fallthru
      _
    // Predicated region
    $region14: #{tpu_custom_call.1} parent=1 // pred_check
      _
    $region15: #{tpu_custom_call.1} parent=1 // pred_check_branch
      %34 = sbr.rel (0) target = $region17
    $region16: #{tpu_custom_call.1} parent=1 // pred_region
      %35 = dma.done [#allocation6], 128
    $region17: #{tpu_custom_call.1} parent=1 // pred_fallthru
      _
    %v36 = vld [vmem:[#allocation2] sm:$0xff]
    %v37 = vld [vmem:[#allocation5] sm:$0xff]
    %39 = vrot.lane.b32.xlu0 %v37, 32
    %v40 = vpop.permute.xlu0 %39
    %vm42 = vcmask 261120
    %v43 = vsel %vm42, %v37, %v40
    %v44 = vadd.f32 %v36, %v43
    %vm45 = vcmask 523264
    %46 = vst.msk [vmem:[#allocation7] sm:$0xff] %vm45, %v44
    // Predicated region
    $region18: #{tpu_custom_call.1} parent=1 // pred_check
      _
    $region19: #{tpu_custom_call.1} parent=1 // pred_check_branch
      %48 = sbr.rel (0) target = $region21
    $region20: #{tpu_custom_call.1} parent=1 // pred_region
      %s50 = ssub.s32 128, 128
      %51 = vsyncadd [#allocation4], %s50
      %s53 = sshll.u32 [#allocation7], 4
      %s54 = int_to_ptr.vmem [resolvable:$true] %s53
      %56 = dma.vmem_to_hbm [thread:$0]  %s54, 128, %s2, [#allocation4]
    $region21: #{tpu_custom_call.1} parent=1 // pred_fallthru
      _
    // Predicated region
    $region22: #{tpu_custom_call.1} parent=1 // pred_check
      _
    $region23: #{tpu_custom_call.1} parent=1 // pred_check_branch
      %58 = sbr.rel (0) target = $region25
    $region24: #{tpu_custom_call.1} parent=1 // pred_region
      %59 = dma.done [#allocation4], 128
    $region25: #{tpu_custom_call.1} parent=1 // pred_fallthru
      _
    %60 = vsyncpa [#allocation3], 1
    %61 = vsyncpa [#allocation6], 1
    %62 = vsyncpa [#allocation4], 1

</llo_original>
